<compile_context>
chip_gen: v7x
topology: tpu7x:2x2x1
jax: 0.10.0
libtpu: 0.0.40
codegen_flags: <defaults>
</compile_context>

<pallas_src>
import functools

import jax
import jax.numpy as jnp
from jax import lax
from jax.experimental import pallas as pl
from jax.experimental.pallas import tpu as pltpu


def _round_up(x, m):
    return (x + m - 1) // m * m


@functools.lru_cache(maxsize=None)
def _vmem_limit_bytes():
    """Raise the 32 MiB scoped default but leave headroom on v7x (64 MiB)."""
    try:
        cap = int(pltpu.get_tpu_info().vmem_capacity_bytes)
    except Exception:
        cap = 64 * 1024 * 1024
    return int(min(96 * 1024 * 1024,
                   max(32 * 1024 * 1024, cap - 16 * 1024 * 1024)))


def _batch_tile(b, cap=128):
    """Largest legal batch tile <= cap (multiple of 8, or the full batch)."""
    if b <= cap:
        return b
    for t in range(cap, 7, -8):
        if b % t == 0:
            return t
    return b


def _pick_tile(dim, align, cap=512):
    """Whole padded dim if it fits one tile, else the largest of 512/256/128
    whose padding waste stays under dim/8 (256-multiples feed v6e/v7x MXU)."""
    full = _round_up(dim, align)
    if full <= cap:
        return full
    for t in (512, 256, 128):
        if t % align == 0 and (_round_up(dim, t) - dim) * 8 <= dim:
            return t
    return 128


def _unrolled_or_fori(start, stop, body, init, max_unroll=32, unroll=4):
    """Fully unroll short static loops; partially unroll long ones."""
    if stop - start <= max_unroll:
        carry = init
        for i in range(start, stop):
            carry = body(i, carry)
        return carry
    return lax.fori_loop(start, stop, body, init, unroll=unroll)


# -----------------------------------------------------------------------------
# Kernel 1: tiled matmul + bias (input projection and hidden2tag)
# -----------------------------------------------------------------------------
def _matmul_bias_kernel(a_ref, b_ref, bias_ref, o_ref, acc_ref):
    k = pl.program_id(2)

    @pl.when(k == 0)
    def _():
        # bias folded into the accumulator init (no epilogue VPU add).
        acc_ref[...] = jnp.broadcast_to(bias_ref[...], acc_ref.shape)

    acc_ref[...] += jnp.dot(a_ref[...], b_ref[...],
                            preferred_element_type=jnp.float32)

    @pl.when(k == pl.num_programs(2) - 1)
    def _():
        o_ref[...] = acc_ref[...].astype(o_ref.dtype)


def matmul_bias(a, b, bias):
    """out = a @ b + bias (bf16 operands, f32 accumulation, MXU-aligned tiles)."""
    M, K = a.shape
    K2, N = b.shape
    assert K == K2
    tm = _pick_tile(M, 8)
    tk = _pick_tile(K, 128)
    tn = _pick_tile(N, 128)
    Mp, Kp, Np = _round_up(M, tm), _round_up(K, tk), _round_up(N, tn)

    a_bf = a.astype(jnp.bfloat16)
    b_bf = b.astype(jnp.bfloat16)
    if (Mp, Kp) != (M, K):
        a_bf = jnp.pad(a_bf, ((0, Mp - M), (0, Kp - K)))
    if (Kp, Np) != (K, N):
        b_bf = jnp.pad(b_bf, ((0, Kp - K), (0, Np - N)))
    bias_p = bias.astype(jnp.float32).reshape(1, N)
    if Np != N:
        bias_p = jnp.pad(bias_p, ((0, 0), (0, Np - N)))

    gi, gj, gk = Mp // tm, Np // tn, Kp // tk
    out = pl.pallas_call(
        _matmul_bias_kernel,
        out_shape=jax.ShapeDtypeStruct((Mp, Np), jnp.float32),
        grid_spec=pltpu.PrefetchScalarGridSpec(
            num_scalar_prefetch=0,
            grid=(gi, gj, gk),
            in_specs=[pl.BlockSpec((tm, tk), lambda i, j, k: (i, k)),
                      pl.BlockSpec((tk, tn), lambda i, j, k: (k, j)),
                      pl.BlockSpec((1, tn), lambda i, j, k: (0, j))],
            out_specs=pl.BlockSpec((tm, tn), lambda i, j, k: (i, j)),
            scratch_shapes=[pltpu.VMEM((tm, tn), jnp.float32)]),
        compiler_params=pltpu.CompilerParams(
            dimension_semantics=("parallel", "parallel", "arbitrary"),
            vmem_limit_bytes=_vmem_limit_bytes()),
        cost_estimate=pl.CostEstimate(
            flops=2 * Mp * Kp * Np,
            transcendentals=0,
            bytes_accessed=2 * (Mp * Kp * gj + Kp * Np * gi)
                           + 4 * (Mp * Np + Np * gi)),
    )(a_bf, b_bf, bias_p)
    if (Mp, Np) != (M, N):
        out = out[:M, :N]
    return out


# -----------------------------------------------------------------------------
# Kernel 2: BiLSTM recurrence (input projection precomputed, fwd/bwd interleaved)
# -----------------------------------------------------------------------------
def _bilstm_recurrence_kernel(gates_ref, lens_ref, whh_f_ref, whh_b_ref,
                              hh_ref, *, hidden):
    S, TB, _ = gates_ref.shape
    H = hidden
    lens = lens_ref[...]                                 # (TB, 1) int32, hoisted
    whh_f = whh_f_ref[...].astype(jnp.bfloat16)          # hoisted, bf16 MXU path
    whh_b = whh_b_ref[...].astype(jnp.bfloat16)
    zeros = jnp.zeros((TB, H), jnp.float32)

    def cell(pre, h_prev, c_prev, whh, m_t):
        g = pre + jnp.dot(h_prev.astype(jnp.bfloat16), whh,
                          preferred_element_type=jnp.float32)
        i = jax.nn.sigmoid(g[:, 0 * H:1 * H])            # gate math stays f32
        f = jax.nn.sigmoid(g[:, 1 * H:2 * H])
        u = jnp.tanh(g[:, 2 * H:3 * H])
        o = jax.nn.sigmoid(g[:, 3 * H:4 * H])
        c = (f * c_prev + i * u) * m_t
        h = o * jnp.tanh(c) * m_t
        return h, c

    # Forward step t and backward step S-1-t are independent dependency chains;
    # running both per iteration overlaps the two h@Whh dots in the MXU pipeline.
    def body(i, carry):
        hf_p, cf_p, hb_p, cb_p = carry
        tf = i
        tb = S - 1 - i
        m_f = (lens > tf).astype(jnp.float32)            # (TB, 1)
        m_b = (lens > tb).astype(jnp.float32)
        hf, cf = cell(gates_ref[tf, :, 0:4 * H], hf_p, cf_p, whh_f, m_f)
        hb, cb = cell(gates_ref[tb, :, 4 * H:8 * H], hb_p, cb_p, whh_b, m_b)
        hh_ref[tf, :, 0:H] = hf                          # combined (S,TB,2H) out
        hh_ref[tb, :, H:2 * H] = hb
        return (hf, cf, hb, cb)

    _unrolled_or_fori(0, S, body, (zeros, zeros, zeros, zeros))


def bilstm_recurrence(gates, lens, whh_f, whh_b, hidden):
    S, B, G8 = gates.shape
    TB = _batch_tile(B)
    # TODO(synk): on v7x with very large S*TB, add an "arbitrary" S-chunk grid
    # axis carrying (h, c) in persistent scratch to stay inside 64 MiB VMEM.
    kernel = functools.partial(_bilstm_recurrence_kernel, hidden=hidden)
    return pl.pallas_call(
        kernel,
        out_shape=jax.ShapeDtypeStruct((S, B, 2 * hidden), jnp.float32),
        grid_spec=pltpu.PrefetchScalarGridSpec(
            num_scalar_prefetch=0,
            grid=(B // TB,),
            in_specs=[pl.BlockSpec((S, TB, G8), lambda b: (0, b, 0)),
                      pl.BlockSpec((TB, 1), lambda b: (b, 0)),
                      pl.BlockSpec((hidden, 4 * hidden), lambda b: (0, 0)),
                      pl.BlockSpec((hidden, 4 * hidden), lambda b: (0, 0))],
            out_specs=pl.BlockSpec((S, TB, 2 * hidden), lambda b: (0, b, 0))),
        compiler_params=pltpu.CompilerParams(
            dimension_semantics=("parallel",),
            vmem_limit_bytes=_vmem_limit_bytes()),
        cost_estimate=pl.CostEstimate(
            flops=2 * 2 * S * B * hidden * 4 * hidden,
            transcendentals=10 * S * B * hidden,
            bytes_accessed=4 * (S * B * G8 + S * B * 2 * hidden
                                + 2 * hidden * 4 * hidden + B)),
    )(gates, lens, whh_f, whh_b)


# -----------------------------------------------------------------------------
# Kernel 3: CRF log-partition (forward algorithm), gridded over batch
# -----------------------------------------------------------------------------
def _crf_partition_kernel(scores_ref, trans_ref, start_row_ref, end_row_ref,
                          lens_ref, logz_ref):
    S, TB, L = scores_ref.shape
    trans = trans_ref[...]                               # (L, L), hoisted
    lens = lens_ref[...]                                 # (TB, 1) int32
    alpha0 = start_row_ref[...] + scores_ref[0]          # (TB, L)

    def body(t, alpha):
        # logsumexp over the previous-tag axis first, then add the emission row
        # (one fewer (TB, L, L) VPU add per timestep than alpha+trans+emis).
        m = alpha[:, :, None] + trans[None, :, :]        # (TB, L, L)
        mmax = jnp.max(m, axis=1, keepdims=True)         # (TB, 1, L)
        lse = mmax[:, 0, :] + jnp.log(jnp.sum(jnp.exp(m - mmax), axis=1))
        new_alpha = lse + scores_ref[t]
        return jnp.where(lens > t, new_alpha, alpha)     # freeze past end

    alpha = _unrolled_or_fori(1, S, body, alpha0)
    last = alpha + end_row_ref[...]                      # + trans[:, END]
    lmax = jnp.max(last, axis=-1, keepdims=True)
    logz_ref[...] = lmax + jnp.log(jnp.sum(jnp.exp(last - lmax),
                                           axis=-1, keepdims=True))


def crf_log_partition(scores, trans, lens, start_idx, end_idx):
    S, B, L = scores.shape
    TB = _batch_tile(B)
    start_row = trans[start_idx].reshape(1, L)           # trans[START, :]
    end_row = trans[:, end_idx].reshape(1, L)            # trans[:, END]
    return pl.pallas_call(
        _crf_partition_kernel,
        out_shape=jax.ShapeDtypeStruct((B, 1), jnp.float32),
        grid_spec=pltpu.PrefetchScalarGridSpec(
            num_scalar_prefetch=0,
            grid=(B // TB,),
            in_specs=[pl.BlockSpec((S, TB, L), lambda b: (0, b, 0)),
                      pl.BlockSpec((L, L), lambda b: (0, 0)),
                      pl.BlockSpec((1, L), lambda b: (0, 0)),
                      pl.BlockSpec((1, L), lambda b: (0, 0)),
                      pl.BlockSpec((TB, 1), lambda b: (b, 0))],
            out_specs=pl.BlockSpec((TB, 1), lambda b: (b, 0))),
        compiler_params=pltpu.CompilerParams(
            dimension_semantics=("parallel",),
            vmem_limit_bytes=_vmem_limit_bytes()),
        cost_estimate=pl.CostEstimate(
            flops=3 * S * B * L * L,
            transcendentals=S * B * L * L,
            bytes_accessed=4 * (S * B * L + L * L + 2 * L + 2 * B)),
    )(scores, trans, start_row, end_row, lens)


# -----------------------------------------------------------------------------
# Parameters + full NNCRF forward (embedding / gather glue in plain JAX)
# -----------------------------------------------------------------------------
def make_params(key, vocab_size, word_emb_dim, char_vocab, char_emb_dim,
                context_dim, hidden, label_size, start_idx, end_idx):
    d_in = word_emb_dim + context_dim + char_emb_dim
    keys = jax.random.split(key, 12)
    n = lambda k, s: (jax.random.normal(k, s, jnp.float32) * 0.1)
    trans = n(keys[11], (label_size, label_size))
    # Reference LinearCRF forbids transitions into START and out of END.
    trans = trans.at[:, start_idx].set(-10000.0)
    trans = trans.at[end_idx, :].set(-10000.0)
    return {
        "word_emb": n(keys[0], (vocab_size, word_emb_dim)),
        "char_emb": n(keys[1], (char_vocab, char_emb_dim)),
        "wih_f": n(keys[2], (d_in, 4 * hidden)),
        "whh_f": n(keys[3], (hidden, 4 * hidden)),
        "b_f": n(keys[4], (1, 4 * hidden)),
        "wih_b": n(keys[5], (d_in, 4 * hidden)),
        "whh_b": n(keys[6], (hidden, 4 * hidden)),
        "b_b": n(keys[7], (1, 4 * hidden)),
        "wout_f": n(keys[8], (hidden, label_size)),
        "wout_b": n(keys[9], (hidden, label_size)),
        "b_out": n(keys[10], (1, label_size)),
        "transition": trans,
    }


def nncrf_forward(params, words, word_seq_lens, context_emb, chars,
                  char_seq_lens, labels, *, hidden, label_size,
                  start_idx, end_idx):
    B, S = words.shape
    H = hidden
    L = label_size

    # --- WordEmbedder (glue): word emb + context emb + char representation ---
    word_emb = params["word_emb"][words]                               # (B,S,Ew)
    char_emb = params["char_emb"][chars]                               # (B,S,Cm,Ec)
    cmax = chars.shape[-1]
    cmask = (jnp.arange(cmax)[None, None, :]
             < char_seq_lens[:, :, None]).astype(jnp.float32)          # (B,S,Cm)
    char_rep = ((char_emb * cmask[..., None]).sum(axis=2)
                / jnp.maximum(char_seq_lens, 1)[..., None].astype(jnp.float32))
    # TODO(synk): original WordEmbedder uses a char BiLSTM; mean-pooled char
    # embeddings are used here instead.
    word_rep = jnp.concatenate([word_emb, context_emb, char_rep], axis=-1)
    # dropout layers run in eval mode -> identity.

    # --- time-major / flattened tensors for the kernels ---
    x = jnp.transpose(word_rep, (1, 0, 2)).astype(jnp.float32)         # (S,B,D)
    D = x.shape[-1]
    x_flat = x.reshape(S * B, D)
    lens = word_seq_lens.reshape(B, 1).astype(jnp.int32)

    # --- hoisted input projection: one big matmul for both LSTM directions ---
    wih_cat = jnp.concatenate([params["wih_f"], params["wih_b"]], axis=1)
    b_cat = jnp.concatenate([params["b_f"], params["b_b"]], axis=1)
    gates = matmul_bias(x_flat, wih_cat, b_cat).reshape(S, B, 8 * H)   # (S,B,8H)

    # --- BiLSTM recurrence (h_prev @ Whh only), interleaved fwd/bwd ---
    hh = bilstm_recurrence(gates, lens, params["whh_f"], params["whh_b"], H)

    # --- deferred hidden2tag: one (S*B, 2H) x (2H, L) matmul, no concat pass ---
    h_cat = hh.reshape(S * B, 2 * H)
    wout_cat = jnp.concatenate([params["wout_f"], params["wout_b"]], axis=0)
    lstm_scores = matmul_bias(h_cat, wout_cat,
                              params["b_out"]).reshape(S, B, L)        # (S,B,L)

    # --- CRF log-partition (unlabeled score), gridded over batch ---
    logz = crf_log_partition(lstm_scores, params["transition"], lens,
                             start_idx, end_idx)                       # (B,1)
    unlabeled = jnp.sum(logz)

    # --- gold-path (labeled) score: integer gathers, no dense one-hot ---
    labels_T = labels.T                                                # (S,B)
    tmask = jnp.arange(S)[:, None] < word_seq_lens[None, :]            # (S,B)
    emis_gold = jnp.take_along_axis(lstm_scores, labels_T[:, :, None],
                                    axis=-1)[..., 0]                   # (S,B)
    emission_term = jnp.sum(jnp.where(tmask, emis_gold, 0.0))
    trans_gold = params["transition"][labels_T[:-1], labels_T[1:]]     # (S-1,B)
    transition_term = jnp.sum(jnp.where(tmask[1:], trans_gold, 0.0))
    start_term = jnp.sum(params["transition"][start_idx, labels_T[0]])
    last_labels = labels_T[word_seq_lens - 1, jnp.arange(B)]           # (B,)
    end_term = jnp.sum(params["transition"][last_labels, end_idx])
    labeled = emission_term + transition_term + start_term + end_term

    return unlabeled - labeled


if __name__ == "__main__":
    B, S = 2, 8
    VOCAB, EW = 50, 16
    CHAR_VOCAB, EC, CMAX = 30, 8, 6
    CONTEXT = 8
    HIDDEN = 16                 # per direction (pad to 128 in production)
    NUM_TAGS = 8
    LABEL_SIZE = NUM_TAGS + 2   # + START + STOP
    START_IDX, END_IDX = NUM_TAGS, NUM_TAGS + 1

    key = jax.random.PRNGKey(0)
    kp, kw, kc, kcl, kl, kctx = jax.random.split(key, 6)

    params = make_params(kp, VOCAB, EW, CHAR_VOCAB, EC, CONTEXT, HIDDEN,
                         LABEL_SIZE, START_IDX, END_IDX)

    words = jax.random.randint(kw, (B, S), 0, VOCAB, dtype=jnp.int32)
    word_seq_lens = jnp.array([S, 5], dtype=jnp.int32)
    context_emb = jax.random.normal(kctx, (B, S, CONTEXT), jnp.float32)
    chars = jax.random.randint(kc, (B, S, CMAX), 0, CHAR_VOCAB, dtype=jnp.int32)
    char_seq_lens = jax.random.randint(kcl, (B, S), 1, CMAX + 1, dtype=jnp.int32)
    labels = jax.random.randint(kl, (B, S), 0, NUM_TAGS, dtype=jnp.int32)

    loss = nncrf_forward(params, words, word_seq_lens, context_emb, chars,
                         char_seq_lens, labels, hidden=HIDDEN,
                         label_size=LABEL_SIZE, start_idx=START_IDX,
                         end_idx=END_IDX)
    loss = jax.block_until_ready(loss)
    assert jnp.isfinite(loss), "non-finite loss"
    print("KERNEL_OK")
</pallas_src>

<mosaic_0001>
module attributes {stable_mosaic.version = 11 : i64} {
  func.func @_matmul_bias_kernel(%arg0: i32, %arg1: i32, %arg2: i32, %arg3: memref<16x128xbf16, #tpu.memory_space<vmem>>, %arg4: memref<128x128xbf16, #tpu.memory_space<vmem>>, %arg5: memref<1x128xf32, #tpu.memory_space<vmem>>, %arg6: memref<16x128xf32, #tpu.memory_space<vmem>>, %arg7: memref<16x128xf32, #tpu.memory_space<vmem>>) attributes {dimension_semantics = [#tpu.dimension_semantics<parallel>, #tpu.dimension_semantics<parallel>, #tpu.dimension_semantics<arbitrary>], iteration_bounds = array<i64: 1, 1, 1>, scalar_prefetch = 0 : i64, scratch_operands = 1 : i64, tpu.core_type = #tpu.core_type<tc>, window_params = [{transform_indices = @transform_0, window_bounds = array<i64: 16, 128>}, {transform_indices = @transform_1, window_bounds = array<i64: 128, 128>}, {transform_indices = @transform_2, window_bounds = array<i64: 1, 128>}, {transform_indices = @transform_3, window_bounds = array<i64: 16, 128>}]} {
    %c0_i32 = arith.constant 0 : i32
    %0 = arith.cmpi eq, %arg2, %c0_i32 : i32
    %1 = arith.extui %0 : i1 to i32
    %c0_i32_0 = arith.constant 0 : i32
    %2 = arith.cmpi ne, %1, %c0_i32_0 : i32
    scf.if %2 {
      %c0_10 = arith.constant 0 : index
      %c0_11 = arith.constant 0 : index
      %12 = vector.load %arg5[%c0_10, %c0_11] : memref<1x128xf32, #tpu.memory_space<vmem>>, vector<1x128xf32>
      %13 = vector.shape_cast %12 : vector<1x128xf32> to vector<1x128xf32>
      %14 = vector.broadcast %13 : vector<1x128xf32> to vector<16x128xf32>
      %c0_12 = arith.constant 0 : index
      %c0_13 = arith.constant 0 : index
      %15 = vector.load %arg7[%c0_12, %c0_13] : memref<16x128xf32, #tpu.memory_space<vmem>>, vector<16x128xf32>
      tpu.vector_store %arg7[%c0_12, %c0_13], %14 {strides = array<i32>} : memref<16x128xf32, #tpu.memory_space<vmem>>, vector<16x128xf32>,
    } else {
    }
    %c0 = arith.constant 0 : index
    %c0_1 = arith.constant 0 : index
    %3 = vector.load %arg7[%c0, %c0_1] : memref<16x128xf32, #tpu.memory_space<vmem>>, vector<16x128xf32>
    %c0_2 = arith.constant 0 : index
    %c0_3 = arith.constant 0 : index
    %4 = vector.load %arg3[%c0_2, %c0_3] : memref<16x128xbf16, #tpu.memory_space<vmem>>, vector<16x128xbf16>
    %c0_4 = arith.constant 0 : index
    %c0_5 = arith.constant 0 : index
    %5 = vector.load %arg4[%c0_4, %c0_5] : memref<128x128xbf16, #tpu.memory_space<vmem>>, vector<128x128xbf16>
    %cst = arith.constant dense<0.000000e+00> : vector<16x128xf32>
    %6 = tpu.matmul %4, %5, %cst {dimension_numbers = #tpu.dot_dimension_numbers<[1], [0], [0], [1], [0, 0, 1, 1], [], []>} : vector<16x128xbf16>, vector<128x128xbf16>, vector<16x128xf32> -> vector<16x128xf32>
    %7 = arith.addf %3, %6 : vector<16x128xf32>
    %c0_6 = arith.constant 0 : index
    %c0_7 = arith.constant 0 : index
    %8 = vector.load %arg7[%c0_6, %c0_7] : memref<16x128xf32, #tpu.memory_space<vmem>>, vector<16x128xf32>
    tpu.vector_store %arg7[%c0_6, %c0_7], %7 {strides = array<i32>} : memref<16x128xf32, #tpu.memory_space<vmem>>, vector<16x128xf32>,
    %c0_i32_8 = arith.constant 0 : i32
    %9 = arith.cmpi eq, %arg2, %c0_i32_8 : i32
    %10 = arith.extui %9 : i1 to i32
    %c0_i32_9 = arith.constant 0 : i32
    %11 = arith.cmpi ne, %10, %c0_i32_9 : i32
    scf.if %11 {
      %c0_10 = arith.constant 0 : index
      %c0_11 = arith.constant 0 : index
      %12 = vector.load %arg7[%c0_10, %c0_11] : memref<16x128xf32, #tpu.memory_space<vmem>>, vector<16x128xf32>
      %c0_12 = arith.constant 0 : index
      %c0_13 = arith.constant 0 : index
      %13 = vector.load %arg6[%c0_12, %c0_13] : memref<16x128xf32, #tpu.memory_space<vmem>>, vector<16x128xf32>
      tpu.vector_store %arg6[%c0_12, %c0_13], %12 {strides = array<i32>} : memref<16x128xf32, #tpu.memory_space<vmem>>, vector<16x128xf32>,
    } else {
    }
    return
  }
  func.func @transform_0(%arg0: i32, %arg1: i32, %arg2: i32) -> (i32, i32) {
    %c0_i32 = arith.constant 0 : i32
    return %arg0, %arg2 : i32, i32
  }
  func.func @transform_1(%arg0: i32, %arg1: i32, %arg2: i32) -> (i32, i32) {
    %c0_i32 = arith.constant 0 : i32
    return %arg2, %arg1 : i32, i32
  }
  func.func @transform_2(%arg0: i32, %arg1: i32, %arg2: i32) -> (i32, i32) {
    %c0_i32 = arith.constant 0 : i32
    %c0_i32_0 = arith.constant 0 : i32
    return %c0_i32, %arg1 : i32, i32
  }
  func.func @transform_3(%arg0: i32, %arg1: i32, %arg2: i32) -> (i32, i32) {
    %c0_i32 = arith.constant 0 : i32
    return %arg0, %arg1 : i32, i32
  }
}

</mosaic_0001>

<llo_original>
// kernel: tpu_custom_call.1
$region0: #{tpu_custom_call.1}
  #allocation0 [shape = 'u32[]', space=smem, size = 0x4, offset = 0x4, fixed_abs, tag = 'smem constant byte address 0x4 - core index']
  #allocation1 [shape = 'u32[144,128]{1,0:T(1,128)}', space=vmem, size = 0x12000, scoped, tag = 'internal scratch']
  #allocation2 [shape = 'f32[16,128]{1,0:T(8,128)}', space=vmem, size = 0x2000, scoped, tag = 'scratch operand']
  %s0 = inlined_call_operand.hbm [shape: bf16[16,128], index: 0, kind: input, shape index: {}]
  %s1 = inlined_call_operand.hbm [shape: bf16[128,128], index: 1, kind: input, shape index: {}]
  %s2 = inlined_call_operand.vmem [shape: f32[1,128], index: 2, kind: input, shape index: {}]
  %s3 = inlined_call_operand.hbm [shape: f32[16,128], index: 3, kind: output, shape index: {}]
  %s4 = sld [smem:[#allocation0]]
  $region38: #{tpu_custom_call.1} parent=0
    _
  %s6 = ssub.s32 1, %s4
  %s7 = scalar_select 0, %s6, %s4
  $region1: #{tpu_custom_call.1} parent=0
    #allocation3 [shape = 'u8[4096]{0}', space=vmem, size = 0x1000, scoped, tag = 'input window, operand 0, single buffered']
    #allocation4 [shape = 's32[1]{0}', space=sflag, size = 0x4, scoped, tag = 'scoped memory for tpu_custom_call.1']
    #allocation5 [shape = 's32[1]{0}', space=sflag, size = 0x4, scoped, tag = 'scoped memory for tpu_custom_call.1']
    #allocation6 [shape = 'u8[32768]{0}', space=vmem, size = 0x8000, scoped, tag = 'input window, operand 1, single buffered']
    #allocation7 [shape = 's32[1]{0}', space=sflag, size = 0x4, scoped, tag = 'scoped memory for tpu_custom_call.1']
    #allocation8 [shape = 'u8[8192]{0}', space=vmem, size = 0x2000, scoped, tag = 'output window, operand 0, single buffered']
    %8 = vsyncpa [#allocation4], 0
    %9 = vsyncpa [#allocation7], 0
    %10 = vsyncpa [#allocation5], 0
    // Predicated region
    $region2: #{tpu_custom_call.1} parent=1 // pred_check
      _
    $region3: #{tpu_custom_call.1} parent=1 // pred_check_branch
      %12 = sbr.rel (0) target = $region5
    $region4: #{tpu_custom_call.1} parent=1 // pred_region
      %s14 = ssub.s32 128, 128
      %15 = vsyncadd [#allocation4], %s14
      %s16 = sshll.u32 [#allocation3], 4
      %s17 = int_to_ptr.vmem [resolvable:$true] %s16
      %22 = dma.hbm_to_vmem [thread:$0]  %s0, 128, %s17, [#allocation4], 64, 64, 4
    $region5: #{tpu_custom_call.1} parent=1 // pred_fallthru
      _
    // Predicated region
    $region6: #{tpu_custom_call.1} parent=1 // pred_check
      _
    $region7: #{tpu_custom_call.1} parent=1 // pred_check_branch
      %24 = sbr.rel (0) target = $region9
    $region8: #{tpu_custom_call.1} parent=1 // pred_region
      %s26 = ssub.s32 1024, 1024
      %27 = vsyncadd [#allocation7], %s26
      %s28 = sshll.u32 [#allocation6], 4
      %s29 = int_to_ptr.vmem [resolvable:$true] %s28
      %34 = dma.hbm_to_vmem [thread:$0]  %s1, 1024, %s29, [#allocation7], 64, 64, 4
    $region9: #{tpu_custom_call.1} parent=1 // pred_fallthru
      _
    // Predicated region
    $region10: #{tpu_custom_call.1} parent=1 // pred_check
      _
    $region11: #{tpu_custom_call.1} parent=1 // pred_check_branch
      %36 = sbr.rel (0) target = $region13
    $region12: #{tpu_custom_call.1} parent=1 // pred_region
      _
    $region13: #{tpu_custom_call.1} parent=1 // pred_fallthru
      _
    // Predicated region
    $region14: #{tpu_custom_call.1} parent=1 // pred_check
      _
    $region15: #{tpu_custom_call.1} parent=1 // pred_check_branch
      %38 = sbr.rel (0) target = $region17
    $region16: #{tpu_custom_call.1} parent=1 // pred_region
      %39 = dma.done [#allocation4], 128
    $region17: #{tpu_custom_call.1} parent=1 // pred_fallthru
      _
    // Predicated region
    $region18: #{tpu_custom_call.1} parent=1 // pred_check
      _
    $region19: #{tpu_custom_call.1} parent=1 // pred_check_branch
      %41 = sbr.rel (0) target = $region21
    $region20: #{tpu_custom_call.1} parent=1 // pred_region
      %42 = dma.done [#allocation7], 1024
    $region21: #{tpu_custom_call.1} parent=1 // pred_fallthru
      _
    %p44 = scmp.eq.s32.totalorder 0, 0
    // Predicated region
    $region22: #{tpu_custom_call.1} parent=1 // pred_check
      %p45 = pneg %p44
    $region23: #{tpu_custom_call.1} parent=1 // pred_check_branch
      %47 = sbr.rel (%p45) target = $region25
    $region24: #{tpu_custom_call.1} parent=1 // pred_region
      %v48 = vld [vmem:[%s2] sm:$0x1]
      %v50 = vlaneseq
      %v51 = vshrl.u32 %v50, 7
      %v52 = vsub.s32 0, %v51
      %v53 = vrot.slane %v48, %v52
      %55 = vst [vmem:[#allocation2] sm:$0xff] %v53
      %56 = vst [vmem:[#allocation2 + $0x8] sm:$0xff] %v53
    $region25: #{tpu_custom_call.1} parent=1 // pred_fallthru
      _
    %v57 = vld [vmem:[#allocation2] sm:$0xff]
    %v58 = vld [vmem:[#allocation2 + $0x8] sm:$0xff]
    %v59 = vld [vmem:[#allocation3] sm:$0xf]
    %v60 = vld [vmem:[#allocation3 + $0x4] sm:$0xf]
    %v61 = vld [vmem:[#allocation6] sm:$0xf]
    %v62 = vld [vmem:[#allocation6 + $0x4] sm:$0xf]
    %v63 = vld [vmem:[#allocation6 + $0x8] sm:$0xf]
    %v64 = vld [vmem:[#allocation6 + $0xc] sm:$0xf]
    %v65 = vld [vmem:[#allocation6 + $0x10] sm:$0xf]
    %v66 = vld [vmem:[#allocation6 + $0x14] sm:$0xf]
    %v67 = vld [vmem:[#allocation6 + $0x18] sm:$0xf]
    %v68 = vld [vmem:[#allocation6 + $0x1c] sm:$0xf]
    %v69 = vld [vmem:[#allocation6 + $0x20] sm:$0xf]
    %v70 = vld [vmem:[#allocation6 + $0x24] sm:$0xf]
    %v71 = vld [vmem:[#allocation6 + $0x28] sm:$0xf]
    %v72 = vld [vmem:[#allocation6 + $0x2c] sm:$0xf]
    %v73 = vld [vmem:[#allocation6 + $0x30] sm:$0xf]
    %v74 = vld [vmem:[#allocation6 + $0x34] sm:$0xf]
    %v75 = vld [vmem:[#allocation6 + $0x38] sm:$0xf]
    %v76 = vld [vmem:[#allocation6 + $0x3c] sm:$0xf]
    %v79 = vunpack.c.l.b16 %v59
    %v80 = vunpack.c.l.b16 %v60
    %v81 = vpack.c.b16 %v80, %v79
    %v99 = vunpack.c.l.b16 %v61
    %v100 = vunpack.c.l.b16 %v62
    %v101 = vunpack.c.l.b16 %v63
    %v102 = vunpack.c.l.b16 %v64
    %v103 = vunpack.c.l.b16 %v65
    %v104 = vunpack.c.l.b16 %v66
    %v105 = vunpack.c.l.b16 %v67
    %v106 = vunpack.c.l.b16 %v68
    %v107 = vunpack.c.l.b16 %v69
    %v108 = vunpack.c.l.b16 %v70
    %v109 = vunpack.c.l.b16 %v71
    %v110 = vunpack.c.l.b16 %v72
    %v111 = vunpack.c.l.b16 %v73
    %v112 = vunpack.c.l.b16 %v74
    %v113 = vunpack.c.l.b16 %v75
    %v114 = vunpack.c.l.b16 %v76
    %v115 = vpack.c.b16 %v100, %v99
    %v116 = vpack.c.b16 %v102, %v101
    %v117 = vpack.c.b16 %v104, %v103
    %v118 = vpack.c.b16 %v106, %v105
    %v119 = vpack.c.b16 %v108, %v107
    %v120 = vpack.c.b16 %v110, %v109
    %v121 = vpack.c.b16 %v112, %v111
    %v122 = vpack.c.b16 %v114, %v113
    %131 = vmatprep.subr.bf16.mxu0 0
    %132 = vmatpush1.bf16.msra.mxu0 %v115
    %133 = vmatprep.subr.bf16.mxu0 0
    %134 = vmatpush1.bf16.msra.mxu0 %v116
    %135 = vmatprep.subr.bf16.mxu0 0
    %136 = vmatpush1.bf16.msra.mxu0 %v117
    %137 = vmatprep.subr.bf16.mxu0 0
    %138 = vmatpush1.bf16.msra.mxu0 %v118
    %139 = vmatprep.subr.bf16.mxu0 0
    %140 = vmatpush1.bf16.msra.mxu0 %v119
    %141 = vmatprep.subr.bf16.mxu0 0
    %142 = vmatpush1.bf16.msra.mxu0 %v120
    %143 = vmatprep.subr.bf16.mxu0 0
    %144 = vmatpush1.bf16.msra.mxu0 %v121
    %145 = vmatprep.subr.bf16.mxu0 0
    %146 = vmatpush1.bf16.msra.mxu0 %v122
    %147 = vmatprep.subr.bf16.mxu0 0
    %148 = vmatpush1.bf16.msra.mxu0 0
    %149 = vmatprep.subr.bf16.mxu0 0
    %150 = vmatpush1.bf16.msra.mxu0 0
    %151 = vmatprep.subr.bf16.mxu0 0
    %152 = vmatpush1.bf16.msra.mxu0 0
    %153 = vmatprep.subr.bf16.mxu0 0
    %154 = vmatpush1.bf16.msra.mxu0 0
    %155 = vmatprep.subr.bf16.mxu0 0
    %156 = vmatpush1.bf16.msra.mxu0 0
    %157 = vmatprep.subr.bf16.mxu0 0
    %158 = vmatpush1.bf16.msra.mxu0 0
    %159 = vmatprep.subr.bf16.mxu0 0
    %160 = vmatpush1.bf16.msra.mxu0 0
    %161 = vmatprep.subr.bf16.mxu0 0
    %162 = vmatpush1.bf16.msra.mxu0 0
    %163 = vmatprep.mubr.bf16.mxu0 0
    %164 = vmatmul.mubr.bf16.gmra.mrb[0].mxu0 %v81
    %v165 = vpop.f32.mrb[0].mxu0
    %v166 = vadd.f32 0.0, %v165
    %v167 = vpop.f32.mrb[0].mxu0
    %v168 = vpop.f32.mrb[0].mxu0
    %v169 = vadd.f32 0.0, %v168
    %v170 = vpop.f32.mrb[0].mxu0
    %171 = vdwg.mxu0
    %v172 = vadd.f32 %v57, %v166
    %v173 = vadd.f32 %v58, %v169
    %174 = vst [vmem:[#allocation2] sm:$0xff] %v172
    %175 = vst [vmem:[#allocation2 + $0x8] sm:$0xff] %v173
    // Predicated region
    $region26: #{tpu_custom_call.1} parent=1 // pred_check
      %p176 = pneg %p44
    $region27: #{tpu_custom_call.1} parent=1 // pred_check_branch
      %178 = sbr.rel (%p176) target = $region29
    $region28: #{tpu_custom_call.1} parent=1 // pred_region
      %v179 = vld [vmem:[#allocation2] sm:$0xff]
      %v180 = vld [vmem:[#allocation2 + $0x8] sm:$0xff]
      %181 = vst [vmem:[#allocation8] sm:$0xff] %v179
      %182 = vst [vmem:[#allocation8 + $0x8] sm:$0xff] %v180
    $region29: #{tpu_custom_call.1} parent=1 // pred_fallthru
      _
    // Predicated region
    $region30: #{tpu_custom_call.1} parent=1 // pred_check
      _
    $region31: #{tpu_custom_call.1} parent=1 // pred_check_branch
      %184 = sbr.rel (0) target = $region33
    $region32: #{tpu_custom_call.1} parent=1 // pred_region
      %s186 = ssub.s32 256, 256
      %187 = vsyncadd [#allocation5], %s186
      %s188 = sshll.u32 [#allocation8], 4
      %s189 = int_to_ptr.vmem [resolvable:$true] %s188
      %194 = dma.vmem_to_hbm [thread:$0]  %s189, 256, %s3, [#allocation5], 128, 128, 8
    $region33: #{tpu_custom_call.1} parent=1 // pred_fallthru
      _
    // Predicated region
    $region34: #{tpu_custom_call.1} parent=1 // pred_check
      _
    $region35: #{tpu_custom_call.1} parent=1 // pred_check_branch
      %196 = sbr.rel (0) target = $region37
    $region36: #{tpu_custom_call.1} parent=1 // pred_region
      %197 = dma.done [#allocation5], 256
    $region37: #{tpu_custom_call.1} parent=1 // pred_fallthru
      _
    %198 = vsyncpa [#allocation4], 1
    %199 = vsyncpa [#allocation7], 1
    %200 = vsyncpa [#allocation5], 1

</llo_original>
